<compile_context>
chip_gen: v5e
topology: v5e:2x2
jax: 0.10.0
libtpu: 0.0.40
codegen_flags: <defaults>
</compile_context>

<pallas_src>
import jax
import jax.numpy as jnp
from jax import lax
from jax.experimental import pallas as pl
from jax.experimental.pallas import tpu as pltpu

_EPS = 1e-12  # matches torch.nn.functional.normalize default eps


def _make_kernel(margin, true_b, block_rows, needs_mask):
    eps2 = _EPS * _EPS

    def kernel(a_ref, p_ref, n_ref, o_ref):
        pid = pl.program_id(0)

        # Load in native dtype; elementwise products stay packed (bf16 fast
        # path on v6e/v7x). Per-row dots accumulate in f32.
        a = a_ref[...]
        p = p_ref[...]
        n = n_ref[...]

        ap = jnp.sum(a * p, axis=-1, keepdims=True, dtype=jnp.float32)  # (TB,1)
        an = jnp.sum(a * n, axis=-1, keepdims=True, dtype=jnp.float32)
        aa = jnp.sum(a * a, axis=-1, keepdims=True, dtype=jnp.float32)
        pp = jnp.sum(p * p, axis=-1, keepdims=True, dtype=jnp.float32)
        nn = jnp.sum(n * n, axis=-1, keepdims=True, dtype=jnp.float32)

        # 1 / max(||x||, eps) computed as rsqrt(max(||x||^2, eps^2)); exact,
        # and rsqrt uses the otherwise-idle EUP slot.
        inv_a = lax.rsqrt(jnp.maximum(aa, eps2))
        inv_p = lax.rsqrt(jnp.maximum(pp, eps2))
        inv_n = lax.rsqrt(jnp.maximum(nn, eps2))

        pos = ap * inv_a * inv_p
        neg = an * inv_a * inv_n
        loss = jnp.maximum(neg - pos + margin, 0.0)  # (TB, 1) f32

        def write(rows):
            # Per-block partial sum, broadcast into one fully-aligned (8,128)
            # tile so the store is an unmasked vst. Wrapper reads [:, 0, 0].
            psum = jnp.sum(rows, axis=0, keepdims=True)  # (1, 1)
            o_ref[...] = jnp.broadcast_to(psum, o_ref.shape)

        if needs_mask:
            last = pid == pl.num_programs(0) - 1

            @pl.when(jnp.logical_not(last))
            def _steady():
                write(loss)

            @pl.when(last)
            def _last():
                # Mask padded rows of the partial final tile (Pallas pads
                # partial blocks with garbage). jnp.where (select) does not
                # propagate NaN/Inf from the non-selected branch.
                row = lax.broadcasted_iota(jnp.int32, loss.shape, 0) + pid * block_rows
                write(jnp.where(row < true_b, loss, 0.0))
        else:
            write(loss)

    return kernel


def triplet_loss(anchor, positive, negative, margin=0.2, block_rows=None):
    assert anchor.shape == positive.shape == negative.shape
    assert anchor.ndim == 2
    B, D = anchor.shape

    itemsize = jnp.dtype(anchor.dtype).itemsize
    align = 16 if itemsize == 2 else 8  # sublane alignment for batch tiles
    row_bytes = D * itemsize

    # Per-generation VMEM sizing (v5e/v6e: 128 MiB, v7x: 64 MiB per core).
    try:
        vmem_cap = int(pltpu.get_tpu_info().vmem_capacity_bytes)
    except Exception:
        vmem_cap = 64 * 1024 * 1024  # conservative fallback (v7x per-core)
    budget = int(vmem_cap * 0.6)  # for 3 input streams x 2 pipeline buffers

    if block_rows is None:
        # Target >= ~4 MiB per input tile per step to amortize the ~0.35us
        # per-grid-step overhead; cap rows to keep vreg/spill pressure sane.
        target_tile_bytes = 4 * 1024 * 1024
        rows_target = max(align, target_tile_bytes // row_bytes)
        rows_vmem = max(align, budget // (6 * row_bytes))
        block_rows = int(min(rows_target, rows_vmem, 8192))

    if block_rows >= B:
        tb = B  # a full-batch block is always a legal block shape
    else:
        tb = max(align, (block_rows // align) * align)

    nb = -(-B // tb)  # number of batch blocks
    kernel = _make_kernel(float(margin), B, tb, needs_mask=(B % tb != 0))

    pipeline_bytes = 6 * tb * row_bytes  # 3 inputs x double buffer
    vmem_limit = min(vmem_cap - (8 << 20),
                     max(pipeline_bytes + (16 << 20), 32 << 20))

    out = pl.pallas_call(
        kernel,
        out_shape=jax.ShapeDtypeStruct((nb, 8, 128), jnp.float32),
        grid_spec=pltpu.PrefetchScalarGridSpec(
            num_scalar_prefetch=0,
            grid=(nb,),
            in_specs=[
                pl.BlockSpec((tb, D), lambda i: (i, 0)),
                pl.BlockSpec((tb, D), lambda i: (i, 0)),
                pl.BlockSpec((tb, D), lambda i: (i, 0)),
            ],
            out_specs=pl.BlockSpec((1, 8, 128), lambda i: (i, 0, 0)),
        ),
        compiler_params=pltpu.CompilerParams(
            # Each block writes only its own partial -> no carried state, so
            # the batch axis can shard across both v7x TensorCores.
            dimension_semantics=("parallel",),
            vmem_limit_bytes=int(vmem_limit),
        ),
    )(anchor, positive, negative)

    # Trivial finalize in the wrapper: sum per-block partials, divide by B.
    return jnp.sum(out[:, 0, 0]) / B


def _reference(anchor, positive, negative, margin=0.2):
    def l2n(x):
        nrm = jnp.sqrt(jnp.sum(x * x, axis=1, keepdims=True))
        return x / jnp.maximum(nrm, _EPS)

    a, p, n = l2n(anchor), l2n(positive), l2n(negative)
    pos = jnp.sum(a * p, axis=1)
    neg = jnp.sum(a * n, axis=1)
    return jnp.mean(jnp.maximum(neg - pos + margin, 0.0))


if __name__ == "__main__":
    key = jax.random.PRNGKey(0)
    k1, k2, k3 = jax.random.split(key, 3)

    # 1) Small, lane-aligned shape consistent with the module (B, D) inputs.
    B, D = 8, 128
    anchor = jax.random.normal(k1, (B, D), dtype=jnp.float32)
    positive = jax.random.normal(k2, (B, D), dtype=jnp.float32)
    negative = jax.random.normal(k3, (B, D), dtype=jnp.float32)

    loss = triplet_loss(anchor, positive, negative)
    jax.block_until_ready(loss)
    ref = _reference(anchor, positive, negative)
    assert jnp.allclose(loss, ref, atol=1e-5, rtol=1e-5), (loss, ref)

    # 2) Multiple grid steps + padded partial last tile: exercises the
    #    parallel per-block partial outputs and the masked last block.
    B2 = 20
    a2 = jax.random.normal(k1, (B2, D), dtype=jnp.float32)
    p2 = jax.random.normal(k2, (B2, D), dtype=jnp.float32)
    n2 = jax.random.normal(k3, (B2, D), dtype=jnp.float32)
    loss2 = triplet_loss(a2, p2, n2, block_rows=8)
    jax.block_until_ready(loss2)
    ref2 = _reference(a2, p2, n2)
    assert jnp.allclose(loss2, ref2, atol=1e-5, rtol=1e-5), (loss2, ref2)

    # 3) bf16 inputs: packed-product fast path, validated at bf16 tolerance.
    B3 = 16
    a3 = jax.random.normal(k1, (B3, D), dtype=jnp.float32).astype(jnp.bfloat16)
    p3 = jax.random.normal(k2, (B3, D), dtype=jnp.float32).astype(jnp.bfloat16)
    n3 = jax.random.normal(k3, (B3, D), dtype=jnp.float32).astype(jnp.bfloat16)
    loss3 = triplet_loss(a3, p3, n3)
    jax.block_until_ready(loss3)
    ref3 = _reference(a3.astype(jnp.float32), p3.astype(jnp.float32),
                      n3.astype(jnp.float32))
    assert jnp.allclose(loss3, ref3, atol=3e-2, rtol=3e-2), (loss3, ref3)

    print("KERNEL_OK")
</pallas_src>

<mosaic_0001>
module attributes {stable_mosaic.version = 11 : i64} {
  func.func @kernel(%arg0: i32, %arg1: memref<8x128xf32, #tpu.memory_space<vmem>>, %arg2: memref<8x128xf32, #tpu.memory_space<vmem>>, %arg3: memref<8x128xf32, #tpu.memory_space<vmem>>, %arg4: memref<1x8x128xf32, #tpu.memory_space<vmem>>) attributes {dimension_semantics = [#tpu.dimension_semantics<parallel>], iteration_bounds = array<i64: 1>, scalar_prefetch = 0 : i64, scratch_operands = 0 : i64, tpu.core_type = #tpu.core_type<tc>, window_params = [{transform_indices = @transform_0, window_bounds = array<i64: 8, 128>}, {transform_indices = @transform_1, window_bounds = array<i64: 8, 128>}, {transform_indices = @transform_2, window_bounds = array<i64: 8, 128>}, {transform_indices = @transform_3, window_bounds = array<i64: 1, 8, 128>}]} {
    %c0 = arith.constant 0 : index
    %c0_0 = arith.constant 0 : index
    %0 = vector.load %arg1[%c0, %c0_0] : memref<8x128xf32, #tpu.memory_space<vmem>>, vector<8x128xf32>
    %c0_1 = arith.constant 0 : index
    %c0_2 = arith.constant 0 : index
    %1 = vector.load %arg2[%c0_1, %c0_2] : memref<8x128xf32, #tpu.memory_space<vmem>>, vector<8x128xf32>
    %c0_3 = arith.constant 0 : index
    %c0_4 = arith.constant 0 : index
    %2 = vector.load %arg3[%c0_3, %c0_4] : memref<8x128xf32, #tpu.memory_space<vmem>>, vector<8x128xf32>
    %3 = arith.mulf %0, %1 : vector<8x128xf32>
    %cst = arith.constant dense<0.000000e+00> : vector<8xf32>
    %4 = vector.multi_reduction <add>, %3, %cst [1] : vector<8x128xf32> to vector<8xf32>
    %5 = vector.shape_cast %4 : vector<8xf32> to vector<8x1xf32>
    %6 = arith.mulf %0, %2 : vector<8x128xf32>
    %cst_5 = arith.constant dense<0.000000e+00> : vector<8xf32>
    %7 = vector.multi_reduction <add>, %6, %cst_5 [1] : vector<8x128xf32> to vector<8xf32>
    %8 = vector.shape_cast %7 : vector<8xf32> to vector<8x1xf32>
    %9 = arith.mulf %0, %0 : vector<8x128xf32>
    %cst_6 = arith.constant dense<0.000000e+00> : vector<8xf32>
    %10 = vector.multi_reduction <add>, %9, %cst_6 [1] : vector<8x128xf32> to vector<8xf32>
    %11 = vector.shape_cast %10 : vector<8xf32> to vector<8x1xf32>
    %12 = arith.mulf %1, %1 : vector<8x128xf32>
    %cst_7 = arith.constant dense<0.000000e+00> : vector<8xf32>
    %13 = vector.multi_reduction <add>, %12, %cst_7 [1] : vector<8x128xf32> to vector<8xf32>
    %14 = vector.shape_cast %13 : vector<8xf32> to vector<8x1xf32>
    %15 = arith.mulf %2, %2 : vector<8x128xf32>
    %cst_8 = arith.constant dense<0.000000e+00> : vector<8xf32>
    %16 = vector.multi_reduction <add>, %15, %cst_8 [1] : vector<8x128xf32> to vector<8xf32>
    %17 = vector.shape_cast %16 : vector<8xf32> to vector<8x1xf32>
    %cst_9 = arith.constant 1.000000e-24 : f32
    %18 = vector.broadcast %cst_9 : f32 to vector<8x1xf32>
    %19 = arith.maximumf %11, %18 : vector<8x1xf32>
    %20 = math.rsqrt %19 : vector<8x1xf32>
    %cst_10 = arith.constant 1.000000e-24 : f32
    %21 = vector.broadcast %cst_10 : f32 to vector<8x1xf32>
    %22 = arith.maximumf %14, %21 : vector<8x1xf32>
    %23 = math.rsqrt %22 : vector<8x1xf32>
    %cst_11 = arith.constant 1.000000e-24 : f32
    %24 = vector.broadcast %cst_11 : f32 to vector<8x1xf32>
    %25 = arith.maximumf %17, %24 : vector<8x1xf32>
    %26 = math.rsqrt %25 : vector<8x1xf32>
    %27 = arith.mulf %5, %20 : vector<8x1xf32>
    %28 = arith.mulf %27, %23 : vector<8x1xf32>
    %29 = arith.mulf %8, %20 : vector<8x1xf32>
    %30 = arith.mulf %29, %26 : vector<8x1xf32>
    %31 = arith.subf %30, %28 : vector<8x1xf32>
    %cst_12 = arith.constant 2.000000e-01 : f32
    %32 = vector.broadcast %cst_12 : f32 to vector<8x1xf32>
    %33 = arith.addf %31, %32 : vector<8x1xf32>
    %cst_13 = arith.constant 0.000000e+00 : f32
    %34 = vector.broadcast %cst_13 : f32 to vector<8x1xf32>
    %35 = arith.maximumf %33, %34 : vector<8x1xf32>
    %cst_14 = arith.constant dense<0.000000e+00> : vector<1xf32>
    %36 = vector.multi_reduction <add>, %35, %cst_14 [0] : vector<8x1xf32> to vector<1xf32>
    %37 = vector.shape_cast %36 : vector<1xf32> to vector<1x1xf32>
    %38 = vector.shape_cast %37 : vector<1x1xf32> to vector<1x1x1xf32>
    %39 = vector.broadcast %38 : vector<1x1x1xf32> to vector<1x8x128xf32>
    %c0_15 = arith.constant 0 : index
    %c0_16 = arith.constant 0 : index
    %c0_17 = arith.constant 0 : index
    %40 = vector.load %arg4[%c0_15, %c0_16, %c0_17] : memref<1x8x128xf32, #tpu.memory_space<vmem>>, vector<1x8x128xf32>
    tpu.vector_store %arg4[%c0_15, %c0_16, %c0_17], %39 {strides = array<i32>} : memref<1x8x128xf32, #tpu.memory_space<vmem>>, vector<1x8x128xf32>,
    return
  }
  func.func @transform_0(%arg0: i32) -> (i32, i32) {
    %c0_i32 = arith.constant 0 : i32
    %c0_i32_0 = arith.constant 0 : i32
    return %arg0, %c0_i32 : i32, i32
  }
  func.func @transform_1(%arg0: i32) -> (i32, i32) {
    %c0_i32 = arith.constant 0 : i32
    %c0_i32_0 = arith.constant 0 : i32
    return %arg0, %c0_i32 : i32, i32
  }
  func.func @transform_2(%arg0: i32) -> (i32, i32) {
    %c0_i32 = arith.constant 0 : i32
    %c0_i32_0 = arith.constant 0 : i32
    return %arg0, %c0_i32 : i32, i32
  }
  func.func @transform_3(%arg0: i32) -> (i32, i32, i32) {
    %c0_i32 = arith.constant 0 : i32
    %c0_i32_0 = arith.constant 0 : i32
    %c0_i32_1 = arith.constant 0 : i32
    return %arg0, %c0_i32, %c0_i32_0 : i32, i32, i32
  }
}

</mosaic_0001>

<llo_original>
// kernel: tpu_custom_call.1
$region0: #{tpu_custom_call.1}
  #allocation0 [shape = 'u32[]', space=smem, size = 0x4, offset = 0x4, fixed_abs, tag = 'smem constant byte address 0x4 - core index']
  #allocation1 [shape = 'u32[72,128]{1,0:T(1,128)}', space=vmem, size = 0x9000, scoped, tag = 'internal scratch']
  %s0 = inlined_call_operand.hbm [shape: f32[8,128], index: 0, kind: input, shape index: {}]
  %s1 = inlined_call_operand.hbm [shape: f32[8,128], index: 1, kind: input, shape index: {}]
  %s2 = inlined_call_operand.hbm [shape: f32[8,128], index: 2, kind: input, shape index: {}]
  %s3 = inlined_call_operand.hbm [shape: f32[1,8,128], index: 3, kind: output, shape index: {}]
  %s4 = sld [smem:[#allocation0]]
  $region34: #{tpu_custom_call.1} parent=0
    _
  %s6 = ssub.s32 1, %s4
  %s7 = scalar_select 0, %s6, %s4
  $region1: #{tpu_custom_call.1} parent=0
    #allocation2 [shape = 'u8[4096]{0}', space=vmem, size = 0x1000, scoped, tag = 'input window, operand 0, single buffered']
    #allocation3 [shape = 's32[1]{0}', space=sflag, size = 0x4, scoped, tag = 'scoped memory for tpu_custom_call.1']
    #allocation4 [shape = 's32[1]{0}', space=sflag, size = 0x4, scoped, tag = 'scoped memory for tpu_custom_call.1']
    #allocation5 [shape = 'u8[4096]{0}', space=vmem, size = 0x1000, scoped, tag = 'input window, operand 1, single buffered']
    #allocation6 [shape = 's32[1]{0}', space=sflag, size = 0x4, scoped, tag = 'scoped memory for tpu_custom_call.1']
    #allocation7 [shape = 'u8[4096]{0}', space=vmem, size = 0x1000, scoped, tag = 'input window, operand 2, single buffered']
    #allocation8 [shape = 'u8[4096]{0}', space=vmem, size = 0x1000, scoped, tag = 'output window, operand 0, single buffered']
    %8 = vsyncpa [#allocation3], 0
    %9 = vsyncpa [#allocation6], 0
    %10 = vsyncpa [#allocation4], 0
    // Predicated region
    $region2: #{tpu_custom_call.1} parent=1 // pred_check
      _
    $region3: #{tpu_custom_call.1} parent=1 // pred_check_branch
      %12 = sbr.rel (0) target = $region5
    $region4: #{tpu_custom_call.1} parent=1 // pred_region
      %14 = vsyncadd [#allocation3], 0
      %s16 = sshll.u32 %s0, 4
      %s17 = int_to_ptr.hbm [resolvable:$true] %s16
      %s18 = sshll.u32 [#allocation2], 4
      %s19 = int_to_ptr.vmem [resolvable:$true] %s18
      %21 = dma.hbm_to_vmem [thread:$0]  %s17, 128, %s19, [#allocation3]
    $region5: #{tpu_custom_call.1} parent=1 // pred_fallthru
      _
    // Predicated region
    $region6: #{tpu_custom_call.1} parent=1 // pred_check
      _
    $region7: #{tpu_custom_call.1} parent=1 // pred_check_branch
      %23 = sbr.rel (0) target = $region9
    $region8: #{tpu_custom_call.1} parent=1 // pred_region
      %25 = vsyncadd [#allocation6], 0
      %s27 = sshll.u32 %s1, 4
      %s28 = int_to_ptr.hbm [resolvable:$true] %s27
      %s29 = sshll.u32 [#allocation5], 4
      %s30 = int_to_ptr.vmem [resolvable:$true] %s29
      %32 = dma.hbm_to_vmem [thread:$0]  %s28, 128, %s30, [#allocation6]
    $region9: #{tpu_custom_call.1} parent=1 // pred_fallthru
      _
    // Predicated region
    $region10: #{tpu_custom_call.1} parent=1 // pred_check
      _
    $region11: #{tpu_custom_call.1} parent=1 // pred_check_branch
      %34 = sbr.rel (0) target = $region13
    $region12: #{tpu_custom_call.1} parent=1 // pred_region
      %36 = vsyncadd [#allocation6], 0
      %s38 = sshll.u32 %s2, 4
      %s39 = int_to_ptr.hbm [resolvable:$true] %s38
      %s40 = sshll.u32 [#allocation7], 4
      %s41 = int_to_ptr.vmem [resolvable:$true] %s40
      %43 = dma.hbm_to_vmem [thread:$0]  %s39, 128, %s41, [#allocation6]
    $region13: #{tpu_custom_call.1} parent=1 // pred_fallthru
      _
    // Predicated region
    $region14: #{tpu_custom_call.1} parent=1 // pred_check
      _
    $region15: #{tpu_custom_call.1} parent=1 // pred_check_branch
      %45 = sbr.rel (0) target = $region17
    $region16: #{tpu_custom_call.1} parent=1 // pred_region
      %47 = dma.done [#allocation3], 128
    $region17: #{tpu_custom_call.1} parent=1 // pred_fallthru
      _
    // Predicated region
    $region18: #{tpu_custom_call.1} parent=1 // pred_check
      _
    $region19: #{tpu_custom_call.1} parent=1 // pred_check_branch
      %49 = sbr.rel (0) target = $region21
    $region20: #{tpu_custom_call.1} parent=1 // pred_region
      %51 = dma.done [#allocation6], 128
    $region21: #{tpu_custom_call.1} parent=1 // pred_fallthru
      _
    // Predicated region
    $region22: #{tpu_custom_call.1} parent=1 // pred_check
      _
    $region23: #{tpu_custom_call.1} parent=1 // pred_check_branch
      %53 = sbr.rel (0) target = $region25
    $region24: #{tpu_custom_call.1} parent=1 // pred_region
      %55 = dma.done [#allocation6], 128
    $region25: #{tpu_custom_call.1} parent=1 // pred_fallthru
      _
    %v56 = vld [vmem:[#allocation2] sm:$0xff]
    %v57 = vld [vmem:[#allocation5] sm:$0xff]
    %v58 = vld [vmem:[#allocation7] sm:$0xff]
    %v59 = vmul.f32 %v56, %v57
    %60 = vadd.xlane.f32.xlu0 %v59
    %v61 = vpop.xlane.xlu0 %60
    %v62 = vmul.f32 %v56, %v58
    %63 = vadd.xlane.f32.xlu0 %v62
    %v64 = vpop.xlane.xlu0 %63
    %v65 = vmul.f32 %v56, %v56
    %66 = vadd.xlane.f32.xlu0 %v65
    %v67 = vpop.xlane.xlu0 %66
    %v68 = vmul.f32 %v57, %v57
    %69 = vadd.xlane.f32.xlu0 %v68
    %v70 = vpop.xlane.xlu0 %69
    %v71 = vmul.f32 %v58, %v58
    %72 = vadd.xlane.f32.xlu0 %v71
    %v73 = vpop.xlane.xlu0 %72
    %v74 = vmax.f32 %v67, 1e-24
    %v75 = vrsqrt.pop %v74
    %v76 = vmul.f32 %v75, %v74
    %v77 = vmul.f32 %v76, %v75
    %v78 = vmul.f32 0.5, %v77
    %v79 = vsub.f32 1.5, %v78
    %v80 = vmul.f32 %v75, %v79
    %vm81 = vweird.f32 %v74
    %vm82 = vweird.f32 %v75
    %vm83 = vmor %vm81, %vm82
    %v84 = vsel %vm83, %v75, %v80
    %v85 = vmax.f32 %v70, 1e-24
    %v86 = vrsqrt.pop %v85
    %v87 = vmul.f32 %v86, %v85
    %v88 = vmul.f32 %v87, %v86
    %v89 = vmul.f32 0.5, %v88
    %v90 = vsub.f32 1.5, %v89
    %v91 = vmul.f32 %v86, %v90
    %vm92 = vweird.f32 %v85
    %vm93 = vweird.f32 %v86
    %vm94 = vmor %vm92, %vm93
    %v95 = vsel %vm94, %v86, %v91
    %v96 = vmax.f32 %v73, 1e-24
    %v97 = vrsqrt.pop %v96
    %v98 = vmul.f32 %v97, %v96
    %v99 = vmul.f32 %v98, %v97
    %v100 = vmul.f32 0.5, %v99
    %v101 = vsub.f32 1.5, %v100
    %v102 = vmul.f32 %v97, %v101
    %vm103 = vweird.f32 %v96
    %vm104 = vweird.f32 %v97
    %vm105 = vmor %vm103, %vm104
    %v106 = vsel %vm105, %v97, %v102
    %v107 = vmul.f32 %v61, %v84
    %v108 = vmul.f32 %v107, %v95
    %v109 = vmul.f32 %v64, %v84
    %v110 = vmul.f32 %v109, %v106
    %v111 = vsub.f32 %v110, %v108
    %v112 = vadd.f32 %v111, 0.2
    %v113 = vmax.f32 %v112, 0.0
    %v114 = vrot.slane %v113, 4
    %v115 = vadd.f32 %v113, %v114
    %v116 = vrot.slane %v115, 2
    %v117 = vadd.f32 %v115, %v116
    %v118 = vrot.slane %v117, 1
    %v119 = vadd.f32 %v117, %v118
    %120 = vst [vmem:[#allocation8] sm:$0xff] %v119
    // Predicated region
    $region26: #{tpu_custom_call.1} parent=1 // pred_check
      _
    $region27: #{tpu_custom_call.1} parent=1 // pred_check_branch
      %122 = sbr.rel (0) target = $region29
    $region28: #{tpu_custom_call.1} parent=1 // pred_region
      %124 = vsyncadd [#allocation4], 0
      %s126 = sshll.u32 [#allocation8], 4
      %s127 = int_to_ptr.vmem [resolvable:$true] %s126
      %s128 = sshll.u32 %s3, 4
      %s129 = int_to_ptr.hbm [resolvable:$true] %s128
      %131 = dma.vmem_to_hbm [thread:$0]  %s127, 128, %s129, [#allocation4]
    $region29: #{tpu_custom_call.1} parent=1 // pred_fallthru
      _
    // Predicated region
    $region30: #{tpu_custom_call.1} parent=1 // pred_check
      _
    $region31: #{tpu_custom_call.1} parent=1 // pred_check_branch
      %133 = sbr.rel (0) target = $region33
    $region32: #{tpu_custom_call.1} parent=1 // pred_region
      %135 = dma.done [#allocation4], 128
    $region33: #{tpu_custom_call.1} parent=1 // pred_fallthru
      _
    %136 = vsyncpa [#allocation3], 1
    %137 = vsyncpa [#allocation6], 1
    %138 = vsyncpa [#allocation4], 1

</llo_original>
